<compile_context>
chip_gen: v5e
topology: v5e:2x2
jax: 0.10.0
libtpu: 0.0.40
codegen_flags: <defaults>
</compile_context>

<pallas_src>
import math

import jax
import jax.numpy as jnp
from jax.experimental import pallas as pl
from jax.experimental.pallas import tpu as pltpu


def _round_up(x, m):
    return (x + m - 1) // m * m


def _make_kernel(use_mxu):
    def kernel(x_ref, w_ref, b_ref, o_ref):
        # x_ref: (TR, DP) packed batch tile, DP = r * D (r batch rows per lane-row)
        # w_ref: (r, DP) block-diagonal packed weight (whole array, VMEM-resident)
        # b_ref: (1,) bias scalar in SMEM
        # o_ref: (TR, r) f32 tile; column i of row j is batch row j*r + i.
        x = x_ref[...]
        w = w_ref[...]
        if use_mxu:
            # MXU contraction over the lane dim (q @ k.T style "NT" matmul),
            # f32 accumulation.  Keeps the XLU free; stays under the HBM roofline.
            y = jax.lax.dot_general(
                x, w, (((1,), (1,)), ((), ())),
                preferred_element_type=jnp.float32)
        else:
            # Large-D fallback (r == 1): f32 VPU multiply-accumulate with a single
            # cross-lane reduce per row-group -- hides under the streaming DMA.
            y = jnp.sum(x.astype(jnp.float32) * w.astype(jnp.float32),
                        axis=1, keepdims=True)
        y = y + b_ref[0]                                   # scalar bias from SMEM
        # sigmoid: exp goes to the EUP slot.
        o_ref[...] = (1.0 / (1.0 + jnp.exp(-y))).astype(o_ref.dtype)

    return kernel


def single_layer_perceptron(x, weight, bias):
    """sigmoid(x @ weight.T + bias).

    x: (B, D) float32 or bfloat16 (bf16 halves HBM traffic; f32 accumulation
       either way).  weight: (1, D) (nn.Linear layout), bias: (1,).
    Returns (B, 1) float32.
    """
    B, D = x.shape
    itemsize = x.dtype.itemsize

    # --- lane packing: r batch rows per 128-lane row (free reshape) -----------
    # r must divide B (avoids any pad copy of x); r*D is kept moderate so the
    # block-diagonal packed weight stays tiny and the extra (zero) MXU work per
    # streamed byte stays far below the MXU/HBM ratio on v5e/v6e/v7x.
    r_cap = max(1, min(128, B, 512 // max(D, 1)))
    r = 1
    for cand in range(r_cap, 0, -1):
        if B % cand == 0:
            r = cand
            break
    dp = r * D
    rp = B // r
    use_mxu = D <= 512

    # --- batch-tile sizing -----------------------------------------------------
    x_row_bytes = _round_up(dp, 128) * itemsize      # lane-padded VMEM row of x
    out_row_bytes = 128 * 4                          # (TR, r) f32 is lane-padded
    stage_budget = 8 * 1024 * 1024                   # per pipeline buffer (v7x-safe)
    tr = max(8, stage_budget // (x_row_bytes + out_row_bytes) // 8 * 8)
    tr = min(tr, rp)
    if rp >= 16:
        # >= 2 grid steps when there is enough work so the "parallel" batch axis
        # can be sharded across both v7x TensorCores.
        tr = min(tr, _round_up(pl.cdiv(rp, 2), 8))
    if tr < rp:
        tr = max(8, tr // 8 * 8)                     # keep full blocks 8-aligned
    grid = (pl.cdiv(rp, tr),)                        # ragged tail -> partial block

    # --- operands ----------------------------------------------------------------
    cdtype = x.dtype
    x_packed = x.reshape(rp, dp)                     # free row-major reshape, no copy
    w_row = jnp.asarray(weight, jnp.float32).reshape(1, D)
    # Block-diagonal packed weight: w_pack[i, j*D + d] = (i == j) * w[d].
    w_pack = (jnp.eye(r, dtype=jnp.float32)[:, :, None] * w_row[None, :, :])
    w_pack = w_pack.reshape(r, dp).astype(cdtype)
    b_vec = jnp.asarray(bias, jnp.float32).reshape(1)

    # --- VMEM accounting / compiler params ---------------------------------------
    w_vmem = _round_up(r, 8) * _round_up(dp, 128) * itemsize
    vmem_need = 2 * tr * (x_row_bytes + out_row_bytes) + w_vmem
    vmem_limit = max(16 * 1024 * 1024,
                     min(int(1.5 * vmem_need) + 4 * 1024 * 1024,
                         56 * 1024 * 1024))          # headroom, < v7x's 64 MiB

    out = pl.pallas_call(
        _make_kernel(use_mxu),
        out_shape=jax.ShapeDtypeStruct((rp, r), jnp.float32),
        grid=grid,
        in_specs=[
            pl.BlockSpec((tr, dp), lambda i: (i, 0)),            # streamed x tile
            pl.BlockSpec(memory_space=pltpu.MemorySpace.VMEM),   # weight: one resident copy
            pl.BlockSpec(memory_space=pltpu.MemorySpace.SMEM),   # bias scalar
        ],
        out_specs=pl.BlockSpec((tr, r), lambda i: (i, 0)),
        compiler_params=pltpu.CompilerParams(
            dimension_semantics=("parallel",),
            vmem_limit_bytes=vmem_limit,
        ),
        cost_estimate=pl.CostEstimate(
            flops=2 * B * D * r,
            transcendentals=B,
            bytes_accessed=B * D * itemsize + r * dp * itemsize + B * 4 + 4,
        ),
    )(x_packed, w_pack, b_vec)

    # (rp, r) -> (B, 1): row-major flatten restores the original batch order.
    return out.reshape(B, 1)


if __name__ == "__main__":
    batch = 8
    input_size = 32

    key = jax.random.PRNGKey(0)
    k_x, k_w, k_b = jax.random.split(key, 3)

    # Deterministic init mimicking nn.Linear's default U(-1/sqrt(fan_in), +).
    bound = 1.0 / math.sqrt(input_size)
    x = jax.random.normal(k_x, (batch, input_size), dtype=jnp.float32)
    weight = jax.random.uniform(k_w, (1, input_size), minval=-bound, maxval=bound,
                                dtype=jnp.float32)
    bias = jax.random.uniform(k_b, (1,), minval=-bound, maxval=bound,
                              dtype=jnp.float32)

    ref = 1.0 / (1.0 + jnp.exp(-(x @ weight.T + bias)))

    # f32 input path.
    out_f32 = jax.block_until_ready(single_layer_perceptron(x, weight, bias))
    assert out_f32.shape == (batch, 1)
    assert jnp.allclose(out_f32, ref, atol=2e-2), "f32 mismatch vs reference"

    # bf16 streaming path (halves HBM traffic; tolerance loosened for the cast).
    out_bf16 = jax.block_until_ready(
        single_layer_perceptron(x.astype(jnp.bfloat16), weight, bias))
    assert out_bf16.shape == (batch, 1)
    assert jnp.allclose(out_bf16, ref, atol=2e-2), "bf16 mismatch vs reference"

    print("KERNEL_OK")
</pallas_src>

<mosaic_0001>
module attributes {stable_mosaic.version = 11 : i64} {
  func.func @kernel(%arg0: i32, %arg1: memref<1x256xf32, #tpu.memory_space<vmem>>, %arg2: memref<8x256xf32, #tpu.memory_space<vmem>>, %arg3: memref<1xf32, #tpu.memory_space<smem>>, %arg4: memref<1x8xf32, #tpu.memory_space<vmem>>) attributes {dimension_semantics = [#tpu.dimension_semantics<parallel>], iteration_bounds = array<i64: 1>, scalar_prefetch = 0 : i64, scratch_operands = 0 : i64, tpu.core_type = #tpu.core_type<tc>, window_params = [{transform_indices = @transform_0, window_bounds = array<i64: 1, 256>}, {pipeline_mode = #tpu.pipeline_mode<synchronous>, transform_indices = @transform_1, window_bounds = array<i64: 8, 256>}, {transform_indices = @transform_2, window_bounds = array<i64: 1>}, {transform_indices = @transform_3, window_bounds = array<i64: 1, 8>}]} {
    %c0 = arith.constant 0 : index
    %c0_0 = arith.constant 0 : index
    %0 = vector.load %arg1[%c0, %c0_0] : memref<1x256xf32, #tpu.memory_space<vmem>>, vector<1x256xf32>
    %c0_1 = arith.constant 0 : index
    %c0_2 = arith.constant 0 : index
    %1 = vector.load %arg2[%c0_1, %c0_2] : memref<8x256xf32, #tpu.memory_space<vmem>>, vector<8x256xf32>
    %cst = arith.constant dense<0.000000e+00> : vector<1x8xf32>
    %2 = tpu.matmul %0, %1, %cst {dimension_numbers = #tpu.dot_dimension_numbers<[1], [1], [0], [0], [0, 0, 1, 0], [], []>} : vector<1x256xf32>, vector<8x256xf32>, vector<1x8xf32> -> vector<1x8xf32>
    %c0_3 = arith.constant 0 : index
    %3 = memref.load %arg3[%c0_3] : memref<1xf32, #tpu.memory_space<smem>>
    %4 = vector.broadcast %3 : f32 to vector<1x8xf32>
    %5 = arith.addf %2, %4 : vector<1x8xf32>
    %cst_4 = arith.constant 0.000000e+00 : f32
    %6 = vector.broadcast %cst_4 : f32 to vector<1x8xf32>
    %7 = arith.subf %6, %5 : vector<1x8xf32>
    %8 = math.exp %7 : vector<1x8xf32>
    %cst_5 = arith.constant 1.000000e+00 : f32
    %9 = vector.broadcast %cst_5 : f32 to vector<1x8xf32>
    %10 = arith.addf %9, %8 : vector<1x8xf32>
    %cst_6 = arith.constant 1.000000e+00 : f32
    %11 = vector.broadcast %cst_6 : f32 to vector<1x8xf32>
    %12 = arith.divf %11, %10 : vector<1x8xf32>
    %c0_7 = arith.constant 0 : index
    %c0_8 = arith.constant 0 : index
    %13 = vector.load %arg4[%c0_7, %c0_8] : memref<1x8xf32, #tpu.memory_space<vmem>>, vector<1x8xf32>
    tpu.vector_store %arg4[%c0_7, %c0_8], %12 {strides = array<i32>} : memref<1x8xf32, #tpu.memory_space<vmem>>, vector<1x8xf32>,
    return
  }
  func.func @transform_0(%arg0: i32) -> (i32, i32) {
    %c0_i32 = arith.constant 0 : i32
    %c0_i32_0 = arith.constant 0 : i32
    return %arg0, %c0_i32 : i32, i32
  }
  func.func @transform_1(%arg0: i32) -> (i32, i32) {
    %c0_i32 = arith.constant 0 : i32
    %c0_i32_0 = arith.constant 0 : i32
    %c0_i32_1 = arith.constant 0 : i32
    return %c0_i32, %c0_i32_0 : i32, i32
  }
  func.func @transform_2(%arg0: i32) -> i32 {
    %c0_i32 = arith.constant 0 : i32
    %c0_i32_0 = arith.constant 0 : i32
    return %c0_i32 : i32
  }
  func.func @transform_3(%arg0: i32) -> (i32, i32) {
    %c0_i32 = arith.constant 0 : i32
    %c0_i32_0 = arith.constant 0 : i32
    return %arg0, %c0_i32 : i32, i32
  }
}

</mosaic_0001>

<llo_original>
// kernel: tpu_custom_call.1
$region0: #{tpu_custom_call.1}
  #allocation0 [shape = 'u32[]', space=smem, size = 0x4, offset = 0x4, fixed_abs, tag = 'smem constant byte address 0x4 - core index']
  #allocation1 [shape = 'u32[72,128]{1,0:T(1,128)}', space=vmem, size = 0x9000, scoped, tag = 'internal scratch']
  #allocation2 [shape = 'f32[1]{0:T(128)S(6)}', space=smem, size = 0x200, scoped, tag = 'scoped memory for tpu_custom_call.1']
  %s0 = inlined_call_operand.vmem [shape: f32[1,256], index: 0, kind: input, shape index: {}]
  %s1 = inlined_call_operand.hbm [shape: f32[8,256], index: 1, kind: input, shape index: {}]
  %s2 = inlined_call_operand.<no memory space> [shape: f32[1], index: 2, kind: input, shape index: {}]
  %s3 = inlined_call_operand.hbm [shape: f32[1,8], index: 3, kind: output, shape index: {}]
  %s4 = sld [smem:[#allocation0]]
  $region26: #{tpu_custom_call.1} parent=0
    _
  %s6 = ssub.s32 1, %s4
  %s7 = scalar_select 0, %s6, %s4
  %8 = sst [smem:[#allocation2]] %s2
  $region1: #{tpu_custom_call.1} parent=0
    #allocation3 [shape = 'u8[8192]{0}', space=vmem, size = 0x2000, scoped, tag = 'input window, operand 1, single buffered']
    #allocation4 [shape = 's32[1]{0}', space=sflag, size = 0x4, scoped, tag = 'scoped memory for tpu_custom_call.1']
    #allocation5 [shape = 's32[1]{0}', space=sflag, size = 0x4, scoped, tag = 'scoped memory for tpu_custom_call.1']
    #allocation6 [shape = 'u8[512]{0}', space=vmem, size = 0x400, scoped, tag = 'output window, operand 0, single buffered']
    %9 = vsyncpa [#allocation4], 0
    %10 = vsyncpa [#allocation5], 0
    // Predicated region
    $region2: #{tpu_custom_call.1} parent=1 // pred_check
      _
    $region3: #{tpu_custom_call.1} parent=1 // pred_check_branch
      %12 = sbr.rel (0) target = $region5
    $region4: #{tpu_custom_call.1} parent=1 // pred_region
      _
    $region5: #{tpu_custom_call.1} parent=1 // pred_fallthru
      _
    // Predicated region
    $region6: #{tpu_custom_call.1} parent=1 // pred_check
      _
    $region7: #{tpu_custom_call.1} parent=1 // pred_check_branch
      %14 = sbr.rel (0) target = $region9
    $region8: #{tpu_custom_call.1} parent=1 // pred_region
      %16 = vsyncadd [#allocation4], 0
      %s18 = sshll.u32 %s1, 4
      %s19 = int_to_ptr.hbm [resolvable:$true] %s18
      %s20 = sshll.u32 [#allocation3], 4
      %s21 = int_to_ptr.vmem [resolvable:$true] %s20
      %23 = dma.hbm_to_vmem [thread:$0]  %s19, 256, %s21, [#allocation4]
    $region9: #{tpu_custom_call.1} parent=1 // pred_fallthru
      _
    // Predicated region
    $region10: #{tpu_custom_call.1} parent=1 // pred_check
      _
    $region11: #{tpu_custom_call.1} parent=1 // pred_check_branch
      %25 = sbr.rel (0) target = $region13
    $region12: #{tpu_custom_call.1} parent=1 // pred_region
      _
    $region13: #{tpu_custom_call.1} parent=1 // pred_fallthru
      _
    // Predicated region
    $region14: #{tpu_custom_call.1} parent=1 // pred_check
      _
    $region15: #{tpu_custom_call.1} parent=1 // pred_check_branch
      %27 = sbr.rel (0) target = $region17
    $region16: #{tpu_custom_call.1} parent=1 // pred_region
      %29 = dma.done [#allocation4], 256
    $region17: #{tpu_custom_call.1} parent=1 // pred_fallthru
      _
    %v30 = vld [vmem:[%s0] sm:$0x3]
    %v31 = vld [vmem:[#allocation3] sm:$0xff]
    %v32 = vld [vmem:[#allocation3 + $0x8] sm:$0xff]
    %s33 = sld [smem:[#allocation2]]
    %v34 = vstv %s33
    %v36 = vperm.slane %v30, 0
    %v37 = vperm.slane %v30, 1
    %40 = vmatpush.xpose.msra.mxu0 0.0
    %41 = vmatpush.xpose.msra.mxu0 0.0
    %42 = vmatpush.xpose.msra.mxu0 0.0
    %43 = vmatpush.xpose.msra.mxu0 0.0
    %44 = vmatpush.xpose.msra.mxu0 0.0
    %45 = vmatpush.xpose.msra.mxu0 0.0
    %46 = vmatpush.xpose.msra.mxu0 0.0
    %47 = vmatpush.xpose.msra.mxu0 0.0
    %48 = vmatpush.xpose.msra.mxu0 0.0
    %49 = vmatpush.xpose.msra.mxu0 0.0
    %50 = vmatpush.xpose.msra.mxu0 0.0
    %51 = vmatpush.xpose.msra.mxu0 0.0
    %52 = vmatpush.xpose.msra.mxu0 0.0
    %53 = vmatpush.xpose.msra.mxu0 0.0
    %54 = vmatpush.xpose.msra.mxu0 0.0
    %55 = vmatpush.xpose.msra.mxu0 %v31
    %56 = vmatmul.f32.gmra.mxu0 %v36
    %v57 = vpop.f32.mrf.mxu0
    %v58 = vadd.f32 %v34, %v57
    %59 = vdwg.mxu0
    %60 = vmatpush.xpose.msra.mxu0 0.0
    %61 = vmatpush.xpose.msra.mxu0 0.0
    %62 = vmatpush.xpose.msra.mxu0 0.0
    %63 = vmatpush.xpose.msra.mxu0 0.0
    %64 = vmatpush.xpose.msra.mxu0 0.0
    %65 = vmatpush.xpose.msra.mxu0 0.0
    %66 = vmatpush.xpose.msra.mxu0 0.0
    %67 = vmatpush.xpose.msra.mxu0 0.0
    %68 = vmatpush.xpose.msra.mxu0 0.0
    %69 = vmatpush.xpose.msra.mxu0 0.0
    %70 = vmatpush.xpose.msra.mxu0 0.0
    %71 = vmatpush.xpose.msra.mxu0 0.0
    %72 = vmatpush.xpose.msra.mxu0 0.0
    %73 = vmatpush.xpose.msra.mxu0 0.0
    %74 = vmatpush.xpose.msra.mxu0 0.0
    %75 = vmatpush.xpose.msra.mxu0 %v32
    %76 = vmatmul.f32.gmra.mxu0 %v37
    %v77 = vpop.f32.mrf.mxu0
    %v78 = vadd.f32 %v58, %v77
    %79 = vdwg.mxu0
    %v80 = vsub.f32 0.0, %v78
    %v81 = vmul.f32 %v80, 1.442695
    %v82 = vpow.pop %v81
    %v83 = vadd.f32 %v82, 1.0
    %v84 = vrcp.pop %v83
    %v85 = vmul.f32 %v83, %v84
    %v86 = vsub.f32 1.0, %v85
    %v87 = vmul.f32 %v84, %v86
    %v88 = vadd.f32 %v84, %v87
    %vm89 = vweird.f32 %v83
    %vm90 = vweird.f32 %v84
    %vm91 = vmor %vm89, %vm90
    %v92 = vsel %vm91, %v84, %v88
    %v93 = vand.u32 2147483647, %v83
    %vm94 = vcmp.eq.f32.partialorder %v93, 8.507059e+37
    %v95 = vand.u32 %v83, 2147483648
    %v96 = vor.u32 1.1754944e-38, %v95
    %v97 = vsel %vm94, %v96, %v92
    %v98 = vmul.f32 1.0, %v97
    %vm99 = vcmask 57344
    %100 = vst.msk [vmem:[#allocation6] sm:$0x1] %vm99, %v98
    // Predicated region
    $region18: #{tpu_custom_call.1} parent=1 // pred_check
      _
    $region19: #{tpu_custom_call.1} parent=1 // pred_check_branch
      %102 = sbr.rel (0) target = $region21
    $region20: #{tpu_custom_call.1} parent=1 // pred_region
      %104 = vsyncadd [#allocation5], 0
      %s106 = sshll.u32 [#allocation6], 4
      %s107 = int_to_ptr.vmem [resolvable:$true] %s106
      %s108 = sshll.u32 %s3, 4
      %s109 = int_to_ptr.hbm [resolvable:$true] %s108
      %111 = dma.vmem_to_hbm [thread:$0]  %s107, 16, %s109, [#allocation5]
    $region21: #{tpu_custom_call.1} parent=1 // pred_fallthru
      _
    // Predicated region
    $region22: #{tpu_custom_call.1} parent=1 // pred_check
      _
    $region23: #{tpu_custom_call.1} parent=1 // pred_check_branch
      %113 = sbr.rel (0) target = $region25
    $region24: #{tpu_custom_call.1} parent=1 // pred_region
      %115 = dma.done [#allocation5], 16
    $region25: #{tpu_custom_call.1} parent=1 // pred_fallthru
      _
    %116 = vsyncpa [#allocation4], 1
    %117 = vsyncpa [#allocation5], 1

</llo_original>
